<compile_context>
chip_gen: v7x
topology: tpu7x:2x2x1
jax: 0.10.0
libtpu: 0.0.40
codegen_flags: <defaults>
</compile_context>

<pallas_src>
import functools

import jax
import jax.numpy as jnp
from jax.experimental import pallas as pl
from jax.experimental.pallas import tpu as pltpu


LANE = 128
NEG_INF = -1e30


def _round_up(x, m):
    return (x + m - 1) // m * m


# ----------------------------------------------------------------------------
# Fused kernel (one batch tile per grid step):
#   thr_ref : (1, Cp)        int32 per-channel valid-position threshold
#   emb_ref : (TB, Lp, D)    bf16 embedding tile (zero-masked / zero-padded)
#   wc_ref  : (Kmax, D, Cp)  bf16 packed conv weights (zero planes for K<Kmax)
#   bc_ref  : (1, Cp)        f32 packed conv bias
#   wd_ref  : (Cp, Pp)       f32 dense weight (pre-transposed, zero-padded)
#   bd_ref  : (1, Pp)        f32 dense bias (-1e30 on padded classes)
#   o_ref   : (TB, Pp)       f32 softmax probs (first P columns are real)
# ----------------------------------------------------------------------------
def _fused_textcnn_kernel(thr_ref, emb_ref, wc_ref, bc_ref, wd_ref, bd_ref,
                          o_ref, *, kmax, t_pos):
    tb, _, d = emb_ref.shape
    c_pad = wc_ref.shape[2]
    p_pad = wd_ref.shape[1]

    emb = emb_ref[...].astype(jnp.float32)                    # (TB, Lp, D)

    # Conv over every kernel size at once: sum of Kmax shifted-window matmuls.
    # Channel groups with kernel size K < Kmax have zero weight planes for
    # k >= K, so this is exactly the "valid" Conv2d of the reference.
    conv = jnp.zeros((tb * t_pos, c_pad), jnp.float32)
    for k in range(kmax):                                     # static unroll
        win = emb[:, k:k + t_pos, :].reshape(tb * t_pos, d)
        conv = conv + jnp.dot(win.astype(jnp.bfloat16), wc_ref[k],
                              preferred_element_type=jnp.float32)

    scores = jnp.maximum(conv + bc_ref[...], 0.0)             # bias + ReLU
    scores = scores.reshape(tb, t_pos, c_pad)

    # In-kernel validity mask: position t is a real conv output for channel c
    # iff t < max_len - K_c + 1 (matches PyTorch's truncation to batch max_len).
    t_idx = jax.lax.broadcasted_iota(jnp.int32, (tb, t_pos, c_pad), 1)
    thr = thr_ref[...].reshape(1, 1, c_pad)
    scores = jnp.where(t_idx < thr, scores, NEG_INF)

    # Max-pool over time: one sublane reduction per tile.
    pooled = jnp.max(scores, axis=1)                          # (TB, Cp)
    # If batch max_len < K every position of that channel is masked; clamp to
    # 0 so the dense matmul stays well-scaled (PyTorch would error there).
    pooled = jnp.where(pooled > 0.5 * NEG_INF, pooled, 0.0)

    logits = jnp.dot(pooled, wd_ref[...],
                     preferred_element_type=jnp.float32) + bd_ref[...]
    m = jnp.max(logits, axis=-1, keepdims=True)
    e = jnp.exp(logits - m)                                   # (TB, Pp)
    denom = jnp.sum(e, axis=-1, keepdims=True)
    o_ref[...] = e * pl.reciprocal(denom, approx=True)


# ----------------------------------------------------------------------------
# Weight packing (pure JAX, wrapper side)
# ----------------------------------------------------------------------------
def _pack_weights(params, kernel_sizes, embed_dim, kernel_num, polarities):
    kmax = max(kernel_sizes)
    kmin = min(kernel_sizes)
    c_total = len(kernel_sizes) * kernel_num
    c_pad = _round_up(c_total, LANE)
    p_pad = _round_up(polarities, LANE)

    # Packed conv weights: (Kmax, D, Cp); kernel sizes K < Kmax get zero planes.
    w_conv = jnp.zeros((kmax, embed_dim, c_pad), jnp.float32)
    b_conv = jnp.zeros((1, c_pad), jnp.float32)
    for g, (K, w, b) in enumerate(
            zip(kernel_sizes, params["conv_w"], params["conv_b"])):
        w_kdc = jnp.transpose(w, (1, 2, 0))                   # (K, D, C)
        c0 = g * kernel_num
        w_conv = w_conv.at[:K, :, c0:c0 + kernel_num].set(w_kdc)
        b_conv = b_conv.at[:, c0:c0 + kernel_num].set(b)
    w_conv = w_conv.astype(jnp.bfloat16)                      # bf16 MXU / DMA

    # Dense: (P, F) -> (F, P), zero-padded; padded classes get -inf-like bias
    # so they vanish in the softmax.  Kept f32 (tiny, preserves prob accuracy).
    w_dense = jnp.zeros((c_pad, p_pad), jnp.float32)
    w_dense = w_dense.at[:c_total, :polarities].set(params["dense_w"].T)
    b_dense = jnp.full((1, p_pad), NEG_INF, jnp.float32)
    b_dense = b_dense.at[:, :polarities].set(params["dense_b"])

    # Per-channel kernel size (padded channels use kmin: they stay "valid",
    # pool to 0 through zero weights/bias, and hit zero dense rows).
    ksize_pc = [K for K in kernel_sizes for _ in range(kernel_num)]
    ksize_pc += [kmin] * (c_pad - c_total)
    ksize_pc = jnp.array(ksize_pc, jnp.int32)

    return w_conv, b_conv, w_dense, b_dense, ksize_pc, c_pad, p_pad


def _choose_batch_tile(batch, l_pad, t_pos, embed_dim, c_pad, p_pad,
                       budget_bytes=20 * 1024 * 1024):
    """Largest sublane-aligned batch tile whose working set fits the budget.

    Budget is kept well under v7x's 64 MiB/TC VMEM (double-buffered bf16
    embedding DMA + f32 in-kernel working set + double-buffered f32 output).
    """
    per_row = (2 * 2 * l_pad * embed_dim        # bf16 emb tile x 2 buffers
               + 4 * l_pad * embed_dim          # f32 upcast copy
               + 2 * 4 * t_pos * c_pad          # conv acc + masked scores (f32)
               + 4 * (c_pad + p_pad)            # pooled + logits
               + 2 * 4 * p_pad)                 # f32 out tile x 2 buffers
    tb = int(budget_bytes // max(per_row, 1))
    tb = max(8, min(64, (tb // 8) * 8))         # aligned, capped for pipelining
    tb = min(tb, _round_up(batch, 8))           # don't over-pad tiny batches
    return tb


# ----------------------------------------------------------------------------
# Full forward pass (glue in traced JAX, hot path in one Pallas kernel)
# ----------------------------------------------------------------------------
def cnn_forward(text_raw_indices, params, kernel_sizes):
    emb_table = params["embedding"]
    B, L = text_raw_indices.shape
    D = emb_table.shape[1]
    kernel_num = params["conv_w"][0].shape[0]
    polarities = params["dense_w"].shape[0]
    kmin, kmax = min(kernel_sizes), max(kernel_sizes)
    assert L >= kmax, "padded sequence length must be >= largest kernel size"

    t_pos = _round_up(L - kmin + 1, 8)          # candidate positions, aligned
    l_pad = t_pos + kmax - 1                    # rows so every window fits

    (w_conv, b_conv, w_dense, b_dense,
     ksize_pc, c_pad, p_pad) = _pack_weights(
        params, kernel_sizes, D, kernel_num, polarities)

    tb = _choose_batch_tile(B, l_pad, t_pos, D, c_pad, p_pad)
    b_pad = _round_up(B, tb)

    # nn.Embedding lookup + per-sequence zero mask (pad_packed semantics),
    # fused with the pad/cast into one XLA pass over emb-sized data.
    emb = emb_table[text_raw_indices].astype(jnp.float32)            # (B, L, D)
    x_len = jnp.sum(text_raw_indices != 0, axis=-1)                  # (B,)
    seq_mask = (jnp.arange(L)[None, :] < x_len[:, None])[..., None]
    emb = jnp.where(seq_mask, emb, 0.0).astype(jnp.bfloat16)
    emb = jnp.pad(emb, ((0, b_pad - B), (0, l_pad - L), (0, 0)))
    # dropout: identity at inference time

    # Batch max length stays a device scalar (no host sync / no recompile);
    # per-channel validity thresholds are the only "mask" shipped to the kernel.
    max_len = jnp.max(x_len).astype(jnp.int32)
    thr = (max_len - ksize_pc + 1).astype(jnp.int32).reshape(1, c_pad)

    grid = (b_pad // tb,)
    flops = 2 * b_pad * t_pos * kmax * D * c_pad + 2 * b_pad * c_pad * p_pad
    bytes_accessed = (emb.size * 2 + thr.size * 4 + w_conv.size * 2 +
                      b_conv.size * 4 + w_dense.size * 4 + b_dense.size * 4 +
                      b_pad * p_pad * 4)

    kernel = functools.partial(_fused_textcnn_kernel, kmax=kmax, t_pos=t_pos)
    out = pl.pallas_call(
        kernel,
        out_shape=jax.ShapeDtypeStruct((b_pad, p_pad), jnp.float32),
        grid_spec=pl.GridSpec(
            grid=grid,
            in_specs=[
                # Constant index_map => weights/thresholds DMA'd once, resident.
                pl.BlockSpec((1, c_pad), lambda i: (0, 0)),            # thr
                pl.BlockSpec((tb, l_pad, D), lambda i: (i, 0, 0)),     # emb tile
                pl.BlockSpec((kmax, D, c_pad), lambda i: (0, 0, 0)),   # conv W
                pl.BlockSpec((1, c_pad), lambda i: (0, 0)),            # conv b
                pl.BlockSpec((c_pad, p_pad), lambda i: (0, 0)),        # dense W
                pl.BlockSpec((1, p_pad), lambda i: (0, 0)),            # dense b
            ],
            out_specs=pl.BlockSpec((tb, p_pad), lambda i: (i, 0)),
        ),
        compiler_params=pltpu.CompilerParams(
            dimension_semantics=("parallel",),          # shards tiles on v7x
            vmem_limit_bytes=48 * 1024 * 1024),
        cost_estimate=pl.CostEstimate(
            flops=flops, transcendentals=b_pad * p_pad,
            bytes_accessed=bytes_accessed),
    )(thr, emb, w_conv, b_conv, w_dense, b_dense)

    return out[:B, :polarities]                                      # (B, P)


# ----------------------------------------------------------------------------
# Deterministic parameter construction + example run
# ----------------------------------------------------------------------------
def build_params(key, vocab, embed_dim, kernel_num, kernel_sizes, polarities):
    keys = jax.random.split(key, 4 + 2 * len(kernel_sizes))
    params = {}
    params["embedding"] = jax.random.normal(
        keys[0], (vocab, embed_dim), jnp.float32)
    params["conv_w"] = []
    params["conv_b"] = []
    for i, K in enumerate(kernel_sizes):
        params["conv_w"].append(
            0.1 * jax.random.normal(keys[1 + 2 * i],
                                    (kernel_num, K, embed_dim), jnp.float32))
        params["conv_b"].append(
            0.1 * jax.random.normal(keys[2 + 2 * i],
                                    (1, kernel_num), jnp.float32))
    in_feat = len(kernel_sizes) * kernel_num
    params["dense_w"] = 0.1 * jax.random.normal(
        keys[-2], (polarities, in_feat), jnp.float32)
    params["dense_b"] = 0.1 * jax.random.normal(
        keys[-1], (1, polarities), jnp.float32)
    return params


if __name__ == "__main__":
    # args: embed_dim=32, kernel_num=16, kernel_sizes=(3,4,5), polarities_dim=3,
    #       batch_normalizations=False, softmax=True, dropout (identity, eval)
    VOCAB = 20
    EMBED_DIM = 32
    KERNEL_NUM = 16
    KERNEL_SIZES = (3, 4, 5)
    POLARITIES = 3
    B, L0 = 2, 10

    root = jax.random.PRNGKey(0)
    k_params, k_idx = jax.random.split(root)

    params = build_params(k_params, VOCAB, EMBED_DIM, KERNEL_NUM,
                          KERNEL_SIZES, POLARITIES)

    # text_raw_indices: padded int token ids (0 = padding)
    idx = jax.random.randint(k_idx, (B, L0), 1, VOCAB, dtype=jnp.int32)
    lengths = jnp.array([8, 6], dtype=jnp.int32)
    pad_mask = jnp.arange(L0)[None, :] < lengths[:, None]
    text_raw_indices = jnp.where(pad_mask, idx, 0)

    fwd = jax.jit(functools.partial(cnn_forward, kernel_sizes=KERNEL_SIZES))
    out = jax.block_until_ready(fwd(text_raw_indices, params))

    assert out.shape == (B, POLARITIES)
    assert bool(jnp.all(jnp.isfinite(out)))
    # rows of a softmax sum to ~1 (approx-reciprocal normalization)
    assert bool(jnp.allclose(jnp.sum(out, axis=-1), 1.0, atol=2e-3))

    print("KERNEL_OK")
</pallas_src>

<mosaic_0001>
module attributes {stable_mosaic.version = 11 : i64} {
  func.func @_fused_textcnn_kernel(%arg0: i32, %arg1: memref<1x128xi32, #tpu.memory_space<vmem>>, %arg2: memref<8x12x32xbf16, #tpu.memory_space<vmem>>, %arg3: memref<5x32x128xbf16, #tpu.memory_space<vmem>>, %arg4: memref<1x128xf32, #tpu.memory_space<vmem>>, %arg5: memref<128x128xf32, #tpu.memory_space<vmem>>, %arg6: memref<1x128xf32, #tpu.memory_space<vmem>>, %arg7: memref<8x128xf32, #tpu.memory_space<vmem>>) attributes {dimension_semantics = [#tpu.dimension_semantics<parallel>], iteration_bounds = array<i64: 1>, scalar_prefetch = 0 : i64, scratch_operands = 0 : i64, tpu.core_type = #tpu.core_type<tc>, window_params = [{pipeline_mode = #tpu.pipeline_mode<synchronous>, transform_indices = @transform_0, window_bounds = array<i64: 1, 128>}, {transform_indices = @transform_1, window_bounds = array<i64: 8, 12, 32>}, {pipeline_mode = #tpu.pipeline_mode<synchronous>, transform_indices = @transform_2, window_bounds = array<i64: 5, 32, 128>}, {pipeline_mode = #tpu.pipeline_mode<synchronous>, transform_indices = @transform_3, window_bounds = array<i64: 1, 128>}, {pipeline_mode = #tpu.pipeline_mode<synchronous>, transform_indices = @transform_4, window_bounds = array<i64: 128, 128>}, {pipeline_mode = #tpu.pipeline_mode<synchronous>, transform_indices = @transform_5, window_bounds = array<i64: 1, 128>}, {transform_indices = @transform_6, window_bounds = array<i64: 8, 128>}]} {
    %c0 = arith.constant 0 : index
    %c0_0 = arith.constant 0 : index
    %c0_1 = arith.constant 0 : index
    %0 = vector.load %arg2[%c0, %c0_0, %c0_1] : memref<8x12x32xbf16, #tpu.memory_space<vmem>>, vector<8x12x32xbf16>
    %1 = arith.extf %0 : vector<8x12x32xbf16> to vector<8x12x32xf32>
    %cst = arith.constant 0.000000e+00 : f32
    %2 = vector.broadcast %cst : f32 to vector<64x128xf32>
    %3 = vector.extract_strided_slice %1 {offsets = [0, 0, 0], sizes = [8, 8, 32], strides = [1, 1, 1]} : vector<8x12x32xf32> to vector<8x8x32xf32>
    %4 = vector.shape_cast %3 : vector<8x8x32xf32> to vector<64x32xf32>
    %5 = arith.truncf %4 : vector<64x32xf32> to vector<64x32xbf16>
    %c0_2 = arith.constant 0 : index
    %c0_3 = arith.constant 0 : index
    %c0_4 = arith.constant 0 : index
    %6 = vector.load %arg3[%c0_2, %c0_3, %c0_4] : memref<5x32x128xbf16, #tpu.memory_space<vmem>>, vector<1x32x128xbf16>
    %7 = vector.shape_cast %6 : vector<1x32x128xbf16> to vector<32x128xbf16>
    %cst_5 = arith.constant dense<0.000000e+00> : vector<64x128xf32>
    %8 = tpu.matmul %5, %7, %cst_5 {dimension_numbers = #tpu.dot_dimension_numbers<[1], [0], [0], [1], [0, 0, 1, 1], [], []>} : vector<64x32xbf16>, vector<32x128xbf16>, vector<64x128xf32> -> vector<64x128xf32>
    %9 = arith.addf %2, %8 : vector<64x128xf32>
    %10 = vector.extract_strided_slice %1 {offsets = [0, 1, 0], sizes = [8, 8, 32], strides = [1, 1, 1]} : vector<8x12x32xf32> to vector<8x8x32xf32>
    %11 = vector.shape_cast %10 : vector<8x8x32xf32> to vector<64x32xf32>
    %12 = arith.truncf %11 : vector<64x32xf32> to vector<64x32xbf16>
    %c1 = arith.constant 1 : index
    %c0_6 = arith.constant 0 : index
    %c0_7 = arith.constant 0 : index
    %13 = vector.load %arg3[%c1, %c0_6, %c0_7] : memref<5x32x128xbf16, #tpu.memory_space<vmem>>, vector<1x32x128xbf16>
    %14 = vector.shape_cast %13 : vector<1x32x128xbf16> to vector<32x128xbf16>
    %cst_8 = arith.constant dense<0.000000e+00> : vector<64x128xf32>
    %15 = tpu.matmul %12, %14, %cst_8 {dimension_numbers = #tpu.dot_dimension_numbers<[1], [0], [0], [1], [0, 0, 1, 1], [], []>} : vector<64x32xbf16>, vector<32x128xbf16>, vector<64x128xf32> -> vector<64x128xf32>
    %16 = arith.addf %9, %15 : vector<64x128xf32>
    %17 = vector.extract_strided_slice %1 {offsets = [0, 2, 0], sizes = [8, 8, 32], strides = [1, 1, 1]} : vector<8x12x32xf32> to vector<8x8x32xf32>
    %18 = vector.shape_cast %17 : vector<8x8x32xf32> to vector<64x32xf32>
    %19 = arith.truncf %18 : vector<64x32xf32> to vector<64x32xbf16>
    %c2 = arith.constant 2 : index
    %c0_9 = arith.constant 0 : index
    %c0_10 = arith.constant 0 : index
    %20 = vector.load %arg3[%c2, %c0_9, %c0_10] : memref<5x32x128xbf16, #tpu.memory_space<vmem>>, vector<1x32x128xbf16>
    %21 = vector.shape_cast %20 : vector<1x32x128xbf16> to vector<32x128xbf16>
    %cst_11 = arith.constant dense<0.000000e+00> : vector<64x128xf32>
    %22 = tpu.matmul %19, %21, %cst_11 {dimension_numbers = #tpu.dot_dimension_numbers<[1], [0], [0], [1], [0, 0, 1, 1], [], []>} : vector<64x32xbf16>, vector<32x128xbf16>, vector<64x128xf32> -> vector<64x128xf32>
    %23 = arith.addf %16, %22 : vector<64x128xf32>
    %24 = vector.extract_strided_slice %1 {offsets = [0, 3, 0], sizes = [8, 8, 32], strides = [1, 1, 1]} : vector<8x12x32xf32> to vector<8x8x32xf32>
    %25 = vector.shape_cast %24 : vector<8x8x32xf32> to vector<64x32xf32>
    %26 = arith.truncf %25 : vector<64x32xf32> to vector<64x32xbf16>
    %c3 = arith.constant 3 : index
    %c0_12 = arith.constant 0 : index
    %c0_13 = arith.constant 0 : index
    %27 = vector.load %arg3[%c3, %c0_12, %c0_13] : memref<5x32x128xbf16, #tpu.memory_space<vmem>>, vector<1x32x128xbf16>
    %28 = vector.shape_cast %27 : vector<1x32x128xbf16> to vector<32x128xbf16>
    %cst_14 = arith.constant dense<0.000000e+00> : vector<64x128xf32>
    %29 = tpu.matmul %26, %28, %cst_14 {dimension_numbers = #tpu.dot_dimension_numbers<[1], [0], [0], [1], [0, 0, 1, 1], [], []>} : vector<64x32xbf16>, vector<32x128xbf16>, vector<64x128xf32> -> vector<64x128xf32>
    %30 = arith.addf %23, %29 : vector<64x128xf32>
    %31 = vector.extract_strided_slice %1 {offsets = [0, 4, 0], sizes = [8, 8, 32], strides = [1, 1, 1]} : vector<8x12x32xf32> to vector<8x8x32xf32>
    %32 = vector.shape_cast %31 : vector<8x8x32xf32> to vector<64x32xf32>
    %33 = arith.truncf %32 : vector<64x32xf32> to vector<64x32xbf16>
    %c4 = arith.constant 4 : index
    %c0_15 = arith.constant 0 : index
    %c0_16 = arith.constant 0 : index
    %34 = vector.load %arg3[%c4, %c0_15, %c0_16] : memref<5x32x128xbf16, #tpu.memory_space<vmem>>, vector<1x32x128xbf16>
    %35 = vector.shape_cast %34 : vector<1x32x128xbf16> to vector<32x128xbf16>
    %cst_17 = arith.constant dense<0.000000e+00> : vector<64x128xf32>
    %36 = tpu.matmul %33, %35, %cst_17 {dimension_numbers = #tpu.dot_dimension_numbers<[1], [0], [0], [1], [0, 0, 1, 1], [], []>} : vector<64x32xbf16>, vector<32x128xbf16>, vector<64x128xf32> -> vector<64x128xf32>
    %37 = arith.addf %30, %36 : vector<64x128xf32>
    %c0_18 = arith.constant 0 : index
    %c0_19 = arith.constant 0 : index
    %38 = vector.load %arg4[%c0_18, %c0_19] : memref<1x128xf32, #tpu.memory_space<vmem>>, vector<1x128xf32>
    %39 = vector.broadcast %38 : vector<1x128xf32> to vector<64x128xf32>
    %40 = arith.addf %37, %39 : vector<64x128xf32>
    %cst_20 = arith.constant 0.000000e+00 : f32
    %41 = vector.broadcast %cst_20 : f32 to vector<64x128xf32>
    %42 = arith.maximumf %40, %41 : vector<64x128xf32>
    %43 = vector.shape_cast %42 : vector<64x128xf32> to vector<8x8x128xf32>
    %44 = tpu.iota {dimensions = array<i32: 1>} : vector<8x8x128xi32>
    %c0_21 = arith.constant 0 : index
    %c0_22 = arith.constant 0 : index
    %45 = vector.load %arg1[%c0_21, %c0_22] : memref<1x128xi32, #tpu.memory_space<vmem>>, vector<1x128xi32>
    %46 = vector.shape_cast %45 : vector<1x128xi32> to vector<1x1x128xi32>
    %47 = vector.broadcast %46 : vector<1x1x128xi32> to vector<8x8x128xi32>
    %48 = arith.cmpi slt, %44, %47 : vector<8x8x128xi32>
    %cst_23 = arith.constant -1.000000e+30 : f32
    %49 = vector.broadcast %cst_23 : f32 to vector<8x8x128xf32>
    %50 = arith.select %48, %43, %49 : vector<8x8x128xi1>, vector<8x8x128xf32>
    %cst_24 = arith.constant dense<0xFF800000> : vector<8x128xf32>
    %51 = vector.multi_reduction <maximumf>, %50, %cst_24 [1] : vector<8x8x128xf32> to vector<8x128xf32>
    %cst_25 = arith.constant -5.000000e+29 : f32
    %52 = vector.broadcast %cst_25 : f32 to vector<8x128xf32>
    %53 = arith.cmpf ogt, %51, %52 : vector<8x128xf32>
    %cst_26 = arith.constant 0.000000e+00 : f32
    %54 = vector.broadcast %cst_26 : f32 to vector<8x128xf32>
    %55 = arith.select %53, %51, %54 : vector<8x128xi1>, vector<8x128xf32>
    %c0_27 = arith.constant 0 : index
    %c0_28 = arith.constant 0 : index
    %56 = vector.load %arg5[%c0_27, %c0_28] : memref<128x128xf32, #tpu.memory_space<vmem>>, vector<128x128xf32>
    %cst_29 = arith.constant dense<0.000000e+00> : vector<8x128xf32>
    %57 = tpu.matmul %55, %56, %cst_29 {dimension_numbers = #tpu.dot_dimension_numbers<[1], [0], [0], [1], [0, 0, 1, 1], [], []>} : vector<8x128xf32>, vector<128x128xf32>, vector<8x128xf32> -> vector<8x128xf32>
    %c0_30 = arith.constant 0 : index
    %c0_31 = arith.constant 0 : index
    %58 = vector.load %arg6[%c0_30, %c0_31] : memref<1x128xf32, #tpu.memory_space<vmem>>, vector<1x128xf32>
    %59 = vector.broadcast %58 : vector<1x128xf32> to vector<8x128xf32>
    %60 = arith.addf %57, %59 : vector<8x128xf32>
    %cst_32 = arith.constant dense<0xFF800000> : vector<8xf32>
    %61 = vector.multi_reduction <maximumf>, %60, %cst_32 [1] : vector<8x128xf32> to vector<8xf32>
    %62 = vector.shape_cast %61 : vector<8xf32> to vector<8x1xf32>
    %63 = vector.broadcast %62 : vector<8x1xf32> to vector<8x128xf32>
    %64 = arith.subf %60, %63 : vector<8x128xf32>
    %65 = math.exp %64 : vector<8x128xf32>
    %cst_33 = arith.constant dense<0.000000e+00> : vector<8xf32>
    %66 = vector.multi_reduction <add>, %65, %cst_33 [1] : vector<8x128xf32> to vector<8xf32>
    %67 = vector.shape_cast %66 : vector<8xf32> to vector<8x1xf32>
    %68 = tpu.reciprocal %67 {approx = true} : vector<8x1xf32> -> vector<8x1xf32>
    %69 = vector.broadcast %68 : vector<8x1xf32> to vector<8x128xf32>
    %70 = arith.mulf %65, %69 : vector<8x128xf32>
    %c0_34 = arith.constant 0 : index
    %c0_35 = arith.constant 0 : index
    %71 = vector.load %arg7[%c0_34, %c0_35] : memref<8x128xf32, #tpu.memory_space<vmem>>, vector<8x128xf32>
    tpu.vector_store %arg7[%c0_34, %c0_35], %70 {strides = array<i32>} : memref<8x128xf32, #tpu.memory_space<vmem>>, vector<8x128xf32>,
    return
  }
  func.func @transform_0(%arg0: i32) -> (i32, i32) {
    %c0_i32 = arith.constant 0 : i32
    %c0_i32_0 = arith.constant 0 : i32
    %c0_i32_1 = arith.constant 0 : i32
    return %c0_i32, %c0_i32_0 : i32, i32
  }
  func.func @transform_1(%arg0: i32) -> (i32, i32, i32) {
    %c0_i32 = arith.constant 0 : i32
    %c0_i32_0 = arith.constant 0 : i32
    %c0_i32_1 = arith.constant 0 : i32
    return %arg0, %c0_i32, %c0_i32_0 : i32, i32, i32
  }
  func.func @transform_2(%arg0: i32) -> (i32, i32, i32) {
    %c0_i32 = arith.constant 0 : i32
    %c0_i32_0 = arith.constant 0 : i32
    %c0_i32_1 = arith.constant 0 : i32
    %c0_i32_2 = arith.constant 0 : i32
    return %c0_i32, %c0_i32_0, %c0_i32_1 : i32, i32, i32
  }
  func.func @transform_3(%arg0: i32) -> (i32, i32) {
    %c0_i32 = arith.constant 0 : i32
    %c0_i32_0 = arith.constant 0 : i32
    %c0_i32_1 = arith.constant 0 : i32
    return %c0_i32, %c0_i32_0 : i32, i32
  }
  func.func @transform_4(%arg0: i32) -> (i32, i32) {
    %c0_i32 = arith.constant 0 : i32
    %c0_i32_0 = arith.constant 0 : i32
    %c0_i32_1 = arith.constant 0 : i32
    return %c0_i32, %c0_i32_0 : i32, i32
  }
  func.func @transform_5(%arg0: i32) -> (i32, i32) {
    %c0_i32 = arith.constant 0 : i32
    %c0_i32_0 = arith.constant 0 : i32
    %c0_i32_1 = arith.constant 0 : i32
    return %c0_i32, %c0_i32_0 : i32, i32
  }
  func.func @transform_6(%arg0: i32) -> (i32, i32) {
    %c0_i32 = arith.constant 0 : i32
    %c0_i32_0 = arith.constant 0 : i32
    return %arg0, %c0_i32 : i32, i32
  }
}

</mosaic_0001>

<llo_original>
// kernel: cnn_forward.1
$region0: #{cnn_forward.1}
  #allocation0 [shape = 'u32[]', space=smem, size = 0x4, offset = 0x4, fixed_abs, tag = 'smem constant byte address 0x4 - core index']
  #allocation1 [shape = 'u32[144,128]{1,0:T(1,128)}', space=vmem, size = 0x12000, scoped, tag = 'internal scratch']
  %s0 = inlined_call_operand.vmem [shape: s32[1,128], index: 0, kind: input, shape index: {}]
  %s1 = inlined_call_operand.vmem [shape: bf16[8,12,32], index: 1, kind: input, shape index: {}]
  %s2 = inlined_call_operand.vmem [shape: bf16[5,32,128], index: 2, kind: input, shape index: {}]
  %s3 = inlined_call_operand.vmem [shape: f32[1,128], index: 3, kind: input, shape index: {}]
  %s4 = inlined_call_operand.vmem [shape: f32[128,128], index: 4, kind: input, shape index: {}]
  %s5 = inlined_call_operand.vmem [shape: f32[1,128], index: 5, kind: input, shape index: {}]
  %s6 = inlined_call_operand.vmem [shape: f32[8,128], index: 6, kind: output, shape index: {}]
  %s7 = sld [smem:[#allocation0]]
  $region34: #{cnn_forward.1} parent=0
    _
  %s9 = ssub.s32 1, %s7
  %s10 = scalar_select 0, %s9, %s7
  // Predicated region
  $region2: #{cnn_forward.1} parent=0 // pred_check
    _
  $region3: #{cnn_forward.1} parent=0 // pred_check_branch
    %12 = sbr.rel (0) target = $region5
  $region4: #{cnn_forward.1} parent=0 // pred_region
    _
  $region5: #{cnn_forward.1} parent=0 // pred_fallthru
    _
  // Predicated region
  $region6: #{cnn_forward.1} parent=0 // pred_check
    _
  $region7: #{cnn_forward.1} parent=0 // pred_check_branch
    %14 = sbr.rel (0) target = $region9
  $region8: #{cnn_forward.1} parent=0 // pred_region
    _
  $region9: #{cnn_forward.1} parent=0 // pred_fallthru
    _
  // Predicated region
  $region10: #{cnn_forward.1} parent=0 // pred_check
    _
  $region11: #{cnn_forward.1} parent=0 // pred_check_branch
    %16 = sbr.rel (0) target = $region13
  $region12: #{cnn_forward.1} parent=0 // pred_region
    _
  $region13: #{cnn_forward.1} parent=0 // pred_fallthru
    _
  // Predicated region
  $region14: #{cnn_forward.1} parent=0 // pred_check
    _
  $region15: #{cnn_forward.1} parent=0 // pred_check_branch
    %18 = sbr.rel (0) target = $region17
  $region16: #{cnn_forward.1} parent=0 // pred_region
    _
  $region17: #{cnn_forward.1} parent=0 // pred_fallthru
    _
  // Predicated region
  $region18: #{cnn_forward.1} parent=0 // pred_check
    _
  $region19: #{cnn_forward.1} parent=0 // pred_check_branch
    %20 = sbr.rel (0) target = $region21
  $region20: #{cnn_forward.1} parent=0 // pred_region
    _
  $region21: #{cnn_forward.1} parent=0 // pred_fallthru
    _
  // Predicated region
  $region22: #{cnn_forward.1} parent=0 // pred_check
    _
  $region23: #{cnn_forward.1} parent=0 // pred_check_branch
    %22 = sbr.rel (0) target = $region25
  $region24: #{cnn_forward.1} parent=0 // pred_region
    _
  $region25: #{cnn_forward.1} parent=0 // pred_fallthru
    _
  %v24 = vld [vmem:[%s1] sm:$0xf]
  %v25 = vld [vmem:[%s1 + $0x4] sm:$0x3]
  %v26 = vld [vmem:[%s1 + $0x8] sm:$0xf]
  %v27 = vld [vmem:[%s1 + $0xc] sm:$0x3]
  %v28 = vld [vmem:[%s1 + $0x10] sm:$0xf]
  %v29 = vld [vmem:[%s1 + $0x14] sm:$0x3]
  %v30 = vld [vmem:[%s1 + $0x18] sm:$0xf]
  %v31 = vld [vmem:[%s1 + $0x1c] sm:$0x3]
  %v32 = vld [vmem:[%s1 + $0x20] sm:$0xf]
  %v33 = vld [vmem:[%s1 + $0x24] sm:$0x3]
  %v34 = vld [vmem:[%s1 + $0x28] sm:$0xf]
  %v35 = vld [vmem:[%s1 + $0x2c] sm:$0x3]
  %v36 = vld [vmem:[%s1 + $0x30] sm:$0xf]
  %v37 = vld [vmem:[%s1 + $0x34] sm:$0x3]
  %v38 = vld [vmem:[%s1 + $0x38] sm:$0xf]
  %v39 = vld [vmem:[%s1 + $0x3c] sm:$0x3]
  %v40 = vunpack.c.l.bf16 %v24
  %v41 = vunpack.c.l.bf16 %v25
  %v42 = vunpack.c.l.bf16 %v26
  %v43 = vunpack.c.l.bf16 %v27
  %v44 = vunpack.c.l.bf16 %v28
  %v45 = vunpack.c.l.bf16 %v29
  %v46 = vunpack.c.l.bf16 %v30
  %v47 = vunpack.c.l.bf16 %v31
  %v48 = vunpack.c.l.bf16 %v32
  %v49 = vunpack.c.l.bf16 %v33
  %v50 = vunpack.c.l.bf16 %v34
  %v51 = vunpack.c.l.bf16 %v35
  %v52 = vunpack.c.l.bf16 %v36
  %v53 = vunpack.c.l.bf16 %v37
  %v54 = vunpack.c.l.bf16 %v38
  %v55 = vunpack.c.l.bf16 %v39
  %v56 = vpack.c.bf16 %v42, %v40
  %v57 = vpack.c.bf16 %v46, %v44
  %v58 = vpack.c.bf16 %v50, %v48
  %v59 = vpack.c.bf16 %v54, %v52
  %v60 = vld [vmem:[%s2] sm:$0xf]
  %v61 = vld [vmem:[%s2 + $0x4] sm:$0xf]
  %v62 = vld [vmem:[%s2 + $0x8] sm:$0xf]
  %v63 = vld [vmem:[%s2 + $0xc] sm:$0xf]
  %vm80 = vcmask 1046528
  %v81 = vrot.slane %v40, 1
  %v82 = vrot.slane %v41, 1
  %v83 = vsel %vm80, %v81, %v82
  %v84 = vrot.slane %v42, 1
  %v85 = vrot.slane %v43, 1
  %v86 = vsel %vm80, %v84, %v85
  %v87 = vrot.slane %v44, 1
  %v88 = vrot.slane %v45, 1
  %v89 = vsel %vm80, %v87, %v88
  %v90 = vrot.slane %v46, 1
  %v91 = vrot.slane %v47, 1
  %v92 = vsel %vm80, %v90, %v91
  %v93 = vrot.slane %v48, 1
  %v94 = vrot.slane %v49, 1
  %v95 = vsel %vm80, %v93, %v94
  %v96 = vrot.slane %v50, 1
  %v97 = vrot.slane %v51, 1
  %v98 = vsel %vm80, %v96, %v97
  %v99 = vrot.slane %v52, 1
  %v100 = vrot.slane %v53, 1
  %v101 = vsel %vm80, %v99, %v100
  %v102 = vrot.slane %v54, 1
  %v103 = vrot.slane %v55, 1
  %v104 = vsel %vm80, %v102, %v103
  %v113 = vpack.c.bf16 %v86, %v83
  %v114 = vpack.c.bf16 %v92, %v89
  %v115 = vpack.c.bf16 %v98, %v95
  %v116 = vpack.c.bf16 %v104, %v101
  %s117 = scalar_lea.vmem %s2, 16
  %v118 = vld [vmem:[%s117] sm:$0xf]
  %v119 = vld [vmem:[%s117 + $0x4] sm:$0xf]
  %v120 = vld [vmem:[%s117 + $0x8] sm:$0xf]
  %v121 = vld [vmem:[%s117 + $0xc] sm:$0xf]
  %v126 = vunpack.c.l.b16 %v118
  %v127 = vunpack.c.l.b16 %v119
  %v128 = vunpack.c.l.b16 %v120
  %v129 = vunpack.c.l.b16 %v121
  %v130 = vpack.c.b16 %v127, %v126
  %v131 = vpack.c.b16 %v129, %v128
  %vm134 = vcmask 261120
  %v136 = vsel %vm134, %v113, 0
  %v139 = vsel %vm134, %v114, 0
  %v142 = vsel %vm134, %v115, 0
  %v145 = vsel %vm134, %v116, 0
  %147 = vmatprep.subr.bf16.mxu0 0
  %148 = vmatpush1.bf16.msra.mxu0 %v130
  %149 = vmatprep.subr.bf16.mxu0 0
  %150 = vmatpush1.bf16.msra.mxu0 %v131
  %151 = vmatprep.subr.bf16.mxu0 0
  %152 = vmatpush1.bf16.msra.mxu0 0
  %153 = vmatprep.subr.bf16.mxu0 0
  %154 = vmatpush1.bf16.msra.mxu0 0
  %155 = vmatprep.subr.bf16.mxu0 0
  %156 = vmatpush1.bf16.msra.mxu0 0
  %157 = vmatprep.subr.bf16.mxu0 0
  %158 = vmatpush1.bf16.msra.mxu0 0
  %159 = vmatprep.subr.bf16.mxu0 0
  %160 = vmatpush1.bf16.msra.mxu0 0
  %161 = vmatprep.subr.bf16.mxu0 0
  %162 = vmatpush1.bf16.msra.mxu0 0
  %163 = vmatprep.subr.bf16.mxu0 0
  %164 = vmatpush1.bf16.msra.mxu0 0
  %165 = vmatprep.subr.bf16.mxu0 0
  %166 = vmatpush1.bf16.msra.mxu0 0
  %167 = vmatprep.subr.bf16.mxu0 0
  %168 = vmatpush1.bf16.msra.mxu0 0
  %169 = vmatprep.subr.bf16.mxu0 0
  %170 = vmatpush1.bf16.msra.mxu0 0
  %171 = vmatprep.subr.bf16.mxu0 0
  %172 = vmatpush1.bf16.msra.mxu0 0
  %173 = vmatprep.subr.bf16.mxu0 0
  %174 = vmatpush1.bf16.msra.mxu0 0
  %175 = vmatprep.subr.bf16.mxu0 0
  %176 = vmatpush1.bf16.msra.mxu0 0
  %177 = vmatprep.subr.bf16.mxu0 0
  %178 = vmatpush1.bf16.msra.mxu0 0
  %179 = vmatprep.mubr.bf16.mxu0 0
  %180 = vmatmul.mubr.bf16.gmra.mrb[0].mxu0 %v136
  %v181 = vpop.f32.mrb[0].mxu0
  %v182 = vadd.f32 0.0, %v181
  %v183 = vpop.f32.mrb[0].mxu0
  %v184 = vpop.f32.mrb[0].mxu0
  %v185 = vadd.f32 0.0, %v184
  %v186 = vpop.f32.mrb[0].mxu0
  %187 = vmatprep.mubr.bf16.mxu0 0
  %188 = vmatmul.mubr.bf16.gmra.mrb[0].mxu0 %v139
  %v189 = vpop.f32.mrb[0].mxu0
  %v190 = vadd.f32 0.0, %v189
  %v191 = vpop.f32.mrb[0].mxu0
  %v192 = vpop.f32.mrb[0].mxu0
  %v193 = vadd.f32 0.0, %v192
  %v194 = vpop.f32.mrb[0].mxu0
  %195 = vmatprep.mubr.bf16.mxu0 0
  %196 = vmatmul.mubr.bf16.gmra.mrb[0].mxu0 %v142
  %v197 = vpop.f32.mrb[0].mxu0
  %v198 = vadd.f32 0.0, %v197
  %v199 = vpop.f32.mrb[0].mxu0
  %v200 = vpop.f32.mrb[0].mxu0
  %v201 = vadd.f32 0.0, %v200
  %v202 = vpop.f32.mrb[0].mxu0
  %203 = vmatprep.mubr.bf16.mxu0 0
  %204 = vmatmul.mubr.bf16.gmra.mrb[0].mxu0 %v145
  %v205 = vpop.f32.mrb[0].mxu0
  %v206 = vadd.f32 0.0, %v205
  %v207 = vpop.f32.mrb[0].mxu0
  %v208 = vpop.f32.mrb[0].mxu0
  %v209 = vadd.f32 0.0, %v208
  %v210 = vpop.f32.mrb[0].mxu0
  %211 = vdwg.mxu0
  %v216 = vunpack.c.l.b16 %v60
  %v217 = vunpack.c.l.b16 %v61
  %v218 = vunpack.c.l.b16 %v62
  %v219 = vunpack.c.l.b16 %v63
  %v220 = vpack.c.b16 %v217, %v216
  %v221 = vpack.c.b16 %v219, %v218
  %v225 = vsel %vm134, %v56, 0
  %v228 = vsel %vm134, %v57, 0
  %v231 = vsel %vm134, %v58, 0
  %v234 = vsel %vm134, %v59, 0
  %236 = vmatprep.subr.bf16.mxu0 0
  %237 = vmatpush1.bf16.msra.mxu0 %v220
  %238 = vmatprep.subr.bf16.mxu0 0
  %239 = vmatpush1.bf16.msra.mxu0 %v221
  %240 = vmatprep.subr.bf16.mxu0 0
  %241 = vmatpush1.bf16.msra.mxu0 0
  %242 = vmatprep.subr.bf16.mxu0 0
  %243 = vmatpush1.bf16.msra.mxu0 0
  %244 = vmatprep.subr.bf16.mxu0 0
  %245 = vmatpush1.bf16.msra.mxu0 0
  %246 = vmatprep.subr.bf16.mxu0 0
  %247 = vmatpush1.bf16.msra.mxu0 0
  %248 = vmatprep.subr.bf16.mxu0 0
  %249 = vmatpush1.bf16.msra.mxu0 0
  %250 = vmatprep.subr.bf16.mxu0 0
  %251 = vmatpush1.bf16.msra.mxu0 0
  %252 = vmatprep.subr.bf16.mxu0 0
  %253 = vmatpush1.bf16.msra.mxu0 0
  %254 = vmatprep.subr.bf16.mxu0 0
  %255 = vmatpush1.bf16.msra.mxu0 0
  %256 = vmatprep.subr.bf16.mxu0 0
  %257 = vmatpush1.bf16.msra.mxu0 0
  %258 = vmatprep.subr.bf16.mxu0 0
  %259 = vmatpush1.bf16.msra.mxu0 0
  %260 = vmatprep.subr.bf16.mxu0 0
  %261 = vmatpush1.bf16.msra.mxu0 0
  %262 = vmatprep.subr.bf16.mxu0 0
  %263 = vmatpush1.bf16.msra.mxu0 0
  %264 = vmatprep.subr.bf16.mxu0 0
  %265 = vmatpush1.bf16.msra.mxu0 0
  %266 = vmatprep.subr.bf16.mxu0 0
  %267 = vmatpush1.bf16.msra.mxu0 0
  %268 = vmatprep.mubr.bf16.mxu0 0
  %269 = vmatmul.mubr.bf16.gmra.mrb[0].mxu0 %v225
  %v270 = vpop.f32.mrb[0].mxu0
  %v271 = vadd.f32 %v182, %v270
  %v272 = vpop.f32.mrb[0].mxu0
  %v273 = vpop.f32.mrb[0].mxu0
  %v274 = vadd.f32 %v185, %v273
  %v275 = vpop.f32.mrb[0].mxu0
  %276 = vmatprep.mubr.bf16.mxu0 0
  %277 = vmatmul.mubr.bf16.gmra.mrb[0].mxu0 %v228
  %v278 = vpop.f32.mrb[0].mxu0
  %v279 = vadd.f32 %v190, %v278
  %v280 = vpop.f32.mrb[0].mxu0
  %v281 = vpop.f32.mrb[0].mxu0
  %v282 = vadd.f32 %v193, %v281
  %v283 = vpop.f32.mrb[0].mxu0
  %284 = vmatprep.mubr.bf16.mxu0 0
  %285 = vmatmul.mubr.bf16.gmra.mrb[0].mxu0 %v231
  %v286 = vpop.f32.mrb[0].mxu0
  %v287 = vadd.f32 %v198, %v286
  %v288 = vpop.f32.mrb[0].mxu0
  %v289 = vpop.f32.mrb[0].mxu0
  %v290 = vadd.f32 %v201, %v289
  %v291 = vpop.f32.mrb[0].mxu0
  %292 = vmatprep.mubr.bf16.mxu0 0
  %293 = vmatmul.mubr.bf16.gmra.mrb[0].mxu0 %v234
  %v294 = vpop.f32.mrb[0].mxu0
  %v295 = vadd.f32 %v206, %v294
  %v296 = vpop.f32.mrb[0].mxu0
  %v297 = vpop.f32.mrb[0].mxu0
  %v298 = vadd.f32 %v209, %v297
  %v299 = vpop.f32.mrb[0].mxu0
  %300 = vdwg.mxu0
  %vm301 = vcmask 1045504
  %v302 = vrot.slane %v40, 2
  %v303 = vrot.slane %v41, 2
  %v304 = vsel %vm301, %v302, %v303
  %v305 = vrot.slane %v42, 2
  %v306 = vrot.slane %v43, 2
  %v307 = vsel %vm301, %v305, %v306
  %v308 = vrot.slane %v44, 2
  %v309 = vrot.slane %v45, 2
  %v310 = vsel %vm301, %v308, %v309
  %v311 = vrot.slane %v46, 2
  %v312 = vrot.slane %v47, 2
  %v313 = vsel %vm301, %v311, %v312
  %v314 = vrot.slane %v48, 2
  %v315 = vrot.slane %v49, 2
  %v316 = vsel %vm301, %v314, %v315
  %v317 = vrot.slane %v50, 2
  %v318 = vrot.slane %v51, 2
  %v319 = vsel %vm301, %v317, %v318
  %v320 = vrot.slane %v52, 2
  %v321 = vrot.slane %v53, 2
  %v322 = vsel %vm301, %v320, %v321
  %v323 = vrot.slane %v54, 2
  %v324 = vrot.slane %v55, 2
  %v325 = vsel %vm301, %v323, %v324
  %v334 = vpack.c.bf16 %v307, %v304
  %v335 = vpack.c.bf16 %v313, %v310
  %v336 = vpack.c.bf16 %v319, %v316
  %v337 = vpack.c.bf16 %v325, %v322
  %s338 = scalar_lea.vmem %s2, 32
  %v339 = vld [vmem:[%s338] sm:$0xf]
  %v340 = vld [vmem:[%s338 + $0x4] sm:$0xf]
  %v341 = vld [vmem:[%s338 + $0x8] sm:$0xf]
  %v342 = vld [vmem:[%s338 + $0xc] sm:$0xf]
  %v347 = vunpack.c.l.b16 %v339
  %v348 = vunpack.c.l.b16 %v340
  %v349 = vunpack.c.l.b16 %v341
  %v350 = vunpack.c.l.b16 %v342
  %v351 = vpack.c.b16 %v348, %v347
  %v352 = vpack.c.b16 %v350, %v349
  %v356 = vsel %vm134, %v334, 0
  %v359 = vsel %vm134, %v335, 0
  %v362 = vsel %vm134, %v336, 0
  %v365 = vsel %vm134, %v337, 0
  %367 = vmatprep.subr.bf16.mxu0 0
  %368 = vmatpush1.bf16.msra.mxu0 %v351
  %369 = vmatprep.subr.bf16.mxu0 0
  %370 = vmatpush1.bf16.msra.mxu0 %v352
  %371 = vmatprep.subr.bf16.mxu0 0
  %372 = vmatpush1.bf16.msra.mxu0 0
  %373 = vmatprep.subr.bf16.mxu0 0
  %374 = vmatpush1.bf16.msra.mxu0 0
  %375 = vmatprep.subr.bf16.mxu0 0
  %376 = vmatpush1.bf16.msra.mxu0 0
  %377 = vmatprep.subr.bf16.mxu0 0
  %378 = vmatpush1.bf16.msra.mxu0 0
  %379 = vmatprep.subr.bf16.mxu0 0
  %380 = vmatpush1.bf16.msra.mxu0 0
  %381 = vmatprep.subr.bf16.mxu0 0
  %382 = vmatpush1.bf16.msra.mxu0 0
  %383 = vmatprep.subr.bf16.mxu0 0
  %384 = vmatpush1.bf16.msra.mxu0 0
  %385 = vmatprep.subr.bf16.mxu0 0
  %386 = vmatpush1.bf16.msra.mxu0 0
  %387 = vmatprep.subr.bf16.mxu0 0
  %388 = vmatpush1.bf16.msra.mxu0 0
  %389 = vmatprep.subr.bf16.mxu0 0
  %390 = vmatpush1.bf16.msra.mxu0 0
  %391 = vmatprep.subr.bf16.mxu0 0
  %392 = vmatpush1.bf16.msra.mxu0 0
  %393 = vmatprep.subr.bf16.mxu0 0
  %394 = vmatpush1.bf16.msra.mxu0 0
  %395 = vmatprep.subr.bf16.mxu0 0
  %396 = vmatpush1.bf16.msra.mxu0 0
  %397 = vmatprep.subr.bf16.mxu0 0
  %398 = vmatpush1.bf16.msra.mxu0 0
  %399 = vmatprep.mubr.bf16.mxu0 0
  %400 = vmatmul.mubr.bf16.gmra.mrb[0].mxu0 %v356
  %v401 = vpop.f32.mrb[0].mxu0
  %v402 = vadd.f32 0.0, %v401
  %v403 = vpop.f32.mrb[0].mxu0
  %v404 = vpop.f32.mrb[0].mxu0
  %v405 = vadd.f32 0.0, %v404
  %v406 = vpop.f32.mrb[0].mxu0
  %407 = vmatprep.mubr.bf16.mxu0 0
  %408 = vmatmul.mubr.bf16.gmra.mrb[0].mxu0 %v359
  %v409 = vpop.f32.mrb[0].mxu0
  %v410 = vadd.f32 0.0, %v409
  %v411 = vpop.f32.mrb[0].mxu0
  %v412 = vpop.f32.mrb[0].mxu0
  %v413 = vadd.f32 0.0, %v412
  %v414 = vpop.f32.mrb[0].mxu0
  %415 = vmatprep.mubr.bf16.mxu0 0
  %416 = vmatmul.mubr.bf16.gmra.mrb[0].mxu0 %v362
  %v417 = vpop.f32.mrb[0].mxu0
  %v418 = vadd.f32 0.0, %v417
  %v419 = vpop.f32.mrb[0].mxu0
  %v420 = vpop.f32.mrb[0].mxu0
  %v421 = vadd.f32 0.0, %v420
  %v422 = vpop.f32.mrb[0].mxu0
  %423 = vmatprep.mubr.bf16.mxu0 0
  %424 = vmatmul.mubr.bf16.gmra.mrb[0].mxu0 %v365
  %v425 = vpop.f32.mrb[0].mxu0
  %v426 = vadd.f32 0.0, %v425
  %v427 = vpop.f32.mrb[0].mxu0
  %v428 = vpop.f32.mrb[0].mxu0
  %v429 = vadd.f32 0.0, %v428
  %v430 = vpop.f32.mrb[0].mxu0
  %431 = vdwg.mxu0
  %v432 = vadd.f32 %v271, %v402
  %v433 = vadd.f32 %v274, %v405
  %v434 = vadd.f32 %v279, %v410
  %v435 = vadd.f32 %v282, %v413
  %v436 = vadd.f32 %v287, %v418
  %v437 = vadd.f32 %v290, %v421
  %v438 = vadd.f32 %v295, %v426
  %v439 = vadd.f32 %v298, %v429
  %vm440 = vcmask 1044480
  %v441 = vrot.slane %v40, 3
  %v442 = vrot.slane %v41, 3
  %v443 = vsel %vm440, %v441, %v442
  %v444 = vrot.slane %v42, 3
  %v445 = vrot.slane %v43, 3
  %v446 = vsel %vm440, %v444, %v445
  %v447 = vrot.slane %v44, 3
  %v448 = vrot.slane %v45, 3
  %v449 = vsel %vm440, %v447, %v448
  %v450 = vrot.slane %v46, 3
  %v451 = vrot.slane %v47, 3
  %v452 = vsel %vm440, %v450, %v451
  %v453 = vrot.slane %v48, 3
  %v454 = vrot.slane %v49, 3
  %v455 = vsel %vm440, %v453, %v454
  %v456 = vrot.slane %v50, 3
  %v457 = vrot.slane %v51, 3
  %v458 = vsel %vm440, %v456, %v457
  %v459 = vrot.slane %v52, 3
  %v460 = vrot.slane %v53, 3
  %v461 = vsel %vm440, %v459, %v460
  %v462 = vrot.slane %v54, 3
  %v463 = vrot.slane %v55, 3
  %v464 = vsel %vm440, %v462, %v463
  %v473 = vpack.c.bf16 %v446, %v443
  %v474 = vpack.c.bf16 %v452, %v449
  %v475 = vpack.c.bf16 %v458, %v455
  %v476 = vpack.c.bf16 %v464, %v461
  %s477 = scalar_lea.vmem %s2, 48
  %v478 = vld [vmem:[%s477] sm:$0xf]
  %v479 = vld [vmem:[%s477 + $0x4] sm:$0xf]
  %v480 = vld [vmem:[%s477 + $0x8] sm:$0xf]
  %v481 = vld [vmem:[%s477 + $0xc] sm:$0xf]
  %v486 = vunpack.c.l.b16 %v478
  %v487 = vunpack.c.l.b16 %v479
  %v488 = vunpack.c.l.b16 %v480
  %v489 = vunpack.c.l.b16 %v481
  %v490 = vpack.c.b16 %v487, %v486
  %v491 = vpack.c.b16 %v489, %v488
  %v495 = vsel %vm134, %v473, 0
  %v498 = vsel %vm134, %v474, 0
  %v501 = vsel %vm134, %v475, 0
  %v504 = vsel %vm134, %v476, 0
  %506 = vmatprep.subr.bf16.mxu0 0
  %507 = vmatpush1.bf16.msra.mxu0 %v490
  %508 = vmatprep.subr.bf16.mxu0 0
  %509 = vmatpush1.bf16.msra.mxu0 %v491
  %510 = vmatprep.subr.bf16.mxu0 0
  %511 = vmatpush1.bf16.msra.mxu0 0
  %512 = vmatprep.subr.bf16.mxu0 0
  %513 = vmatpush1.bf16.msra.mxu0 0
  %514 = vmatprep.subr.bf16.mxu0 0
  %515 = vmatpush1.bf16.msra.mxu0 0
  %516 = vmatprep.subr.bf16.mxu0 0
  %517 = vmatpush1.bf16.msra.mxu0 0
  %518 = vmatprep.subr.bf16.mxu0 0
  %519 = vmatpush1.bf16.msra.mxu0 0
  %520 = vmatprep.subr.bf16.mxu0 0
  %521 = vmatpush1.bf16.msra.mxu0 0
  %522 = vmatprep.subr.bf16.mxu0 0
  %523 = vmatpush1.bf16.msra.mxu0 0
  %524 = vmatprep.subr.bf16.mxu0 0
  %525 = vmatpush1.bf16.msra.mxu0 0
  %526 = vmatprep.subr.bf16.mxu0 0
  %527 = vmatpush1.bf16.msra.mxu0 0
  %528 = vmatprep.subr.bf16.mxu0 0
  %529 = vmatpush1.bf16.msra.mxu0 0
  %530 = vmatprep.subr.bf16.mxu0 0
  %531 = vmatpush1.bf16.msra.mxu0 0
  %532 = vmatprep.subr.bf16.mxu0 0
  %533 = vmatpush1.bf16.msra.mxu0 0
  %534 = vmatprep.subr.bf16.mxu0 0
  %535 = vmatpush1.bf16.msra.mxu0 0
  %536 = vmatprep.subr.bf16.mxu0 0
  %537 = vmatpush1.bf16.msra.mxu0 0
  %538 = vmatprep.mubr.bf16.mxu0 0
  %539 = vmatmul.mubr.bf16.gmra.mrb[0].mxu0 %v495
  %v540 = vpop.f32.mrb[0].mxu0
  %v541 = vadd.f32 0.0, %v540
  %v542 = vpop.f32.mrb[0].mxu0
  %v543 = vpop.f32.mrb[0].mxu0
  %v544 = vadd.f32 0.0, %v543
  %v545 = vpop.f32.mrb[0].mxu0
  %546 = vmatprep.mubr.bf16.mxu0 0
  %547 = vmatmul.mubr.bf16.gmra.mrb[0].mxu0 %v498
  %v548 = vpop.f32.mrb[0].mxu0
  %v549 = vadd.f32 0.0, %v548
  %v550 = vpop.f32.mrb[0].mxu0
  %v551 = vpop.f32.mrb[0].mxu0
  %v552 = vadd.f32 0.0, %v551
  %v553 = vpop.f32.mrb[0].mxu0
  %554 = vmatprep.mubr.bf16.mxu0 0
  %555 = vmatmul.mubr.bf16.gmra.mrb[0].mxu0 %v501
  %v556 = vpop.f32.mrb[0].mxu0
  %v557 = vadd.f32 0.0, %v556
  %v558 = vpop.f32.mrb[0].mxu0
  %v559 = vpop.f32.mrb[0].mxu0
  %v560 = vadd.f32 0.0, %v559
  %v561 = vpop.f32.mrb[0].mxu0
  %562 = vmatprep.mubr.bf16.mxu0 0
  %563 = vmatmul.mubr.bf16.gmra.mrb[0].mxu0 %v504
  %v564 = vpop.f32.mrb[0].mxu0
  %v565 = vadd.f32 0.0, %v564
  %v566 = vpop.f32.mrb[0].mxu0
  %v567 = vpop.f32.mrb[0].mxu0
  %v568 = vadd.f32 0.0, %v567
  %v569 = vpop.f32.mrb[0].mxu0
  %570 = vdwg.mxu0
  %v571 = vadd.f32 %v432, %v541
  %v572 = vadd.f32 %v433, %v544
  %v573 = vadd.f32 %v434, %v549
  %v574 = vadd.f32 %v435, %v552
  %v575 = vadd.f32 %v436, %v557
  %v576 = vadd.f32 %v437, %v560
  %v577 = vadd.f32 %v438, %v565
  %v578 = vadd.f32 %v439, %v568
  %vm579 = vcmask 1043456
  %v580 = vrot.slane %v40, 4
  %v581 = vrot.slane %v41, 4
  %v582 = vsel %vm579, %v580, %v581
  %v583 = vrot.slane %v42, 4
  %v584 = vrot.slane %v43, 4
  %v585 = vsel %vm579, %v583, %v584
  %v586 = vrot.slane %v44, 4
  %v587 = vrot.slane %v45, 4
  %v588 = vsel %vm579, %v586, %v587
  %v589 = vrot.slane %v46, 4
  %v590 = vrot.slane %v47, 4
  %v591 = vsel %vm579, %v589, %v590
  %v592 = vrot.slane %v48, 4
  %v593 = vrot.slane %v49, 4
  %v594 = vsel %vm579, %v592, %v593
  %v595 = vrot.slane %v50, 4
  %v596 = vrot.slane %v51, 4
  %v597 = vsel %vm579, %v595, %v596
  %v598 = vrot.slane %v52, 4
  %v599 = vrot.slane %v53, 4
  %v600 = vsel %vm579, %v598, %v599
  %v601 = vrot.slane %v54, 4
  %v602 = vrot.slane %v55, 4
  %v603 = vsel %vm579, %v601, %v602
  %v612 = vpack.c.bf16 %v585, %v582
  %v613 = vpack.c.bf16 %v591, %v588
  %v614 = vpack.c.bf16 %v597, %v594
  %v615 = vpack.c.bf16 %v603, %v600
  %s616 = scalar_lea.vmem %s2, 64
  %v617 = vld [vmem:[%s616] sm:$0xf]
  %v618 = vld [vmem:[%s616 + $0x4] sm:$0xf]
  %v619 = vld [vmem:[%s616 + $0x8] sm:$0xf]
  %v620 = vld [vmem:[%s616 + $0xc] sm:$0xf]
  %v625 = vunpack.c.l.b16 %v617
  %v626 = vunpack.c.l.b16 %v618
  %v627 = vunpack.c.l.b16 %v619
  %v628 = vunpack.c.l.b16 %v620
  %v629 = vpack.c.b16 %v626, %v625
  %v630 = vpack.c.b16 %v628, %v627
  %v634 = vsel %vm134, %v612, 0
  %v637 = vsel %vm134, %v613, 0
  %v640 = vsel %vm134, %v614, 0
  %v643 = vsel %vm134, %v615, 0
  %645 = vmatprep.subr.bf16.mxu0 0
  %646 = vmatpush1.bf16.msra.mxu0 %v629
  %647 = vmatprep.subr.bf16.mxu0 0
  %648 = vmatpush1.bf16.msra.mxu0 %v630
  %649 = vmatprep.subr.bf16.mxu0 0
  %650 = vmatpush1.bf16.msra.mxu0 0
  %651 = vmatprep.subr.bf16.mxu0 0
  %652 = vmatpush1.bf16.msra.mxu0 0
  %653 = vmatprep.subr.bf16.mxu0 0
  %654 = vmatpush1.bf16.msra.mxu0 0
  %655 = vmatprep.subr.bf16.mxu0 0
  %656 = vmatpush1.bf16.msra.mxu0 0
  %657 = vmatprep.subr.bf16.mxu0 0
  %658 = vmatpush1.bf16.msra.mxu0 0
  %659 = vmatprep.subr.bf16.mxu0 0
  %660 = vmatpush1.bf16.msra.mxu0 0
  %661 = vmatprep.subr.bf16.mxu0 0
  %662 = vmatpush1.bf16.msra.mxu0 0
  %663 = vmatprep.subr.bf16.mxu0 0
  %664 = vmatpush1.bf16.msra.mxu0 0
  %665 = vmatprep.subr.bf16.mxu0 0
  %666 = vmatpush1.bf16.msra.mxu0 0
  %667 = vmatprep.subr.bf16.mxu0 0
  %668 = vmatpush1.bf16.msra.mxu0 0
  %669 = vmatprep.subr.bf16.mxu0 0
  %670 = vmatpush1.bf16.msra.mxu0 0
  %671 = vmatprep.subr.bf16.mxu0 0
  %672 = vmatpush1.bf16.msra.mxu0 0
  %673 = vmatprep.subr.bf16.mxu0 0
  %674 = vmatpush1.bf16.msra.mxu0 0
  %675 = vmatprep.subr.bf16.mxu0 0
  %676 = vmatpush1.bf16.msra.mxu0 0
  %677 = vmatprep.mubr.bf16.mxu0 0
  %678 = vmatmul.mubr.bf16.gmra.mrb[0].mxu0 %v634
  %v679 = vpop.f32.mrb[0].mxu0
  %v680 = vadd.f32 0.0, %v679
  %v681 = vpop.f32.mrb[0].mxu0
  %v682 = vpop.f32.mrb[0].mxu0
  %v683 = vadd.f32 0.0, %v682
  %v684 = vpop.f32.mrb[0].mxu0
  %685 = vmatprep.mubr.bf16.mxu0 0
  %686 = vmatmul.mubr.bf16.gmra.mrb[0].mxu0 %v637
  %v687 = vpop.f32.mrb[0].mxu0
  %v688 = vadd.f32 0.0, %v687
  %v689 = vpop.f32.mrb[0].mxu0
  %v690 = vpop.f32.mrb[0].mxu0
  %v691 = vadd.f32 0.0, %v690
  %v692 = vpop.f32.mrb[0].mxu0
  %693 = vmatprep.mubr.bf16.mxu0 0
  %694 = vmatmul.mubr.bf16.gmra.mrb[0].mxu0 %v640
  %v695 = vpop.f32.mrb[0].mxu0
  %v696 = vadd.f32 0.0, %v695
  %v697 = vpop.f32.mrb[0].mxu0
  %v698 = vpop.f32.mrb[0].mxu0
  %v699 = vadd.f32 0.0, %v698
  %v700 = vpop.f32.mrb[0].mxu0
  %701 = vmatprep.mubr.bf16.mxu0 0
  %702 = vmatmul.mubr.bf16.gmra.mrb[0].mxu0 %v643
  %v703 = vpop.f32.mrb[0].mxu0
  %v704 = vadd.f32 0.0, %v703
  %v705 = vpop.f32.mrb[0].mxu0
  %v706 = vpop.f32.mrb[0].mxu0
  %v707 = vadd.f32 0.0, %v706
  %v708 = vpop.f32.mrb[0].mxu0
  %709 = vdwg.mxu0
  %v710 = vadd.f32 %v571, %v680
  %v711 = vadd.f32 %v572, %v683
  %v712 = vadd.f32 %v573, %v688
  %v713 = vadd.f32 %v574, %v691
  %v714 = vadd.f32 %v575, %v696
  %v715 = vadd.f32 %v576, %v699
  %v716 = vadd.f32 %v577, %v704
  %v717 = vadd.f32 %v578, %v707
  %v718 = vld [vmem:[%s3] sm:$0x1]
  %v720 = vlaneseq
  %v721 = vshrl.u32 %v720, 7
  %v722 = vsub.s32 0, %v721
  %v723 = vrot.slane %v718, %v722
  %v725 = vadd.f32 %v710, %v723
  %v726 = vadd.f32 %v711, %v723
  %v727 = vadd.f32 %v712, %v723
  %v728 = vadd.f32 %v713, %v723
  %v729 = vadd.f32 %v714, %v723
  %v730 = vadd.f32 %v715, %v723
  %v731 = vadd.f32 %v716, %v723
  %v732 = vadd.f32 %v717, %v723
  %v733 = vmax.f32 %v725, 0.0
  %v734 = vmax.f32 %v726, 0.0
  %v735 = vmax.f32 %v727, 0.0
  %v736 = vmax.f32 %v728, 0.0
  %v737 = vmax.f32 %v729, 0.0
  %v738 = vmax.f32 %v730, 0.0
  %v739 = vmax.f32 %v731, 0.0
  %v740 = vmax.f32 %v732, 0.0
  %v741 = vlaneseq
  %v742 = vshrl.u32 %v741, 7
  %v743 = vld [vmem:[%s0] sm:$0x1]
  %v744 = vlaneseq
  %v745 = vshrl.u32 %v744, 7
  %v746 = vsub.s32 0, %v745
  %v747 = vrot.slane %v743, %v746
  %vm748 = vcmp.lt.s32.totalorder %v742, %v747
  %v749 = vsel %vm748, %v733, -1e+30
  %v750 = vsel %vm748, %v734, -1e+30
  %v751 = vsel %vm748, %v735, -1e+30
  %v752 = vsel %vm748, %v736, -1e+30
  %v753 = vsel %vm748, %v737, -1e+30
  %v754 = vsel %vm748, %v738, -1e+30
  %v755 = vsel %vm748, %v739, -1e+30
  %v756 = vsel %vm748, %v740, -1e+30
  %v757 = vrot.slane %v749, 4
  %v758 = vmax.f32 %v749, %v757
  %v759 = vrot.slane %v758, 2
  %v760 = vmax.f32 %v758, %v759
  %v761 = vrot.slane %v760, 1
  %v762 = vmax.f32 %v760, %v761
  %v763 = vrot.slane %v750, 4
  %v764 = vmax.f32 %v750, %v763
  %v765 = vrot.slane %v764, 2
  %v766 = vmax.f32 %v764, %v765
  %v767 = vrot.slane %v766, 1
  %v768 = vmax.f32 %v766, %v767
  %v769 = vrot.slane %v751, 4
  %v770 = vmax.f32 %v751, %v769
  %v771 = vrot.slane %v770, 2
  %v772 = vmax.f32 %v770, %v771
  %v773 = vrot.slane %v772, 1
  %v774 = vmax.f32 %v772, %v773
  %v775 = vrot.slane %v752, 4
  %v776 = vmax.f32 %v752, %v775
  %v777 = vrot.slane %v776, 2
  %v778 = vmax.f32 %v776, %v777
  %v779 = vrot.slane %v778, 1
  %v780 = vmax.f32 %v778, %v779
  %v781 = vrot.slane %v753, 4
  %v782 = vmax.f32 %v753, %v781
  %v783 = vrot.slane %v782, 2
  %v784 = vmax.f32 %v782, %v783
  %v785 = vrot.slane %v784, 1
  %v786 = vmax.f32 %v784, %v785
  %v787 = vrot.slane %v754, 4
  %v788 = vmax.f32 %v754, %v787
  %v789 = vrot.slane %v788, 2
  %v790 = vmax.f32 %v788, %v789
  %v791 = vrot.slane %v790, 1
  %v792 = vmax.f32 %v790, %v791
  %v793 = vrot.slane %v755, 4
  %v794 = vmax.f32 %v755, %v793
  %v795 = vrot.slane %v794, 2
  %v796 = vmax.f32 %v794, %v795
  %v797 = vrot.slane %v796, 1
  %v798 = vmax.f32 %v796, %v797
  %v799 = vrot.slane %v756, 4
  %v800 = vmax.f32 %v756, %v799
  %v801 = vrot.slane %v800, 2
  %v802 = vmax.f32 %v800, %v801
  %v803 = vrot.slane %v802, 1
  %v804 = vmax.f32 %v802, %v803
  %vm805 = vcmp.gt.f32.partialorder %v762, -5e+29
  %vm806 = vcmp.gt.f32.partialorder %v768, -5e+29
  %vm807 = vcmp.gt.f32.partialorder %v774, -5e+29
  %vm808 = vcmp.gt.f32.partialorder %v780, -5e+29
  %vm809 = vcmp.gt.f32.partialorder %v786, -5e+29
  %vm810 = vcmp.gt.f32.partialorder %v792, -5e+29
  %vm811 = vcmp.gt.f32.partialorder %v798, -5e+29
  %vm812 = vcmp.gt.f32.partialorder %v804, -5e+29
  %v813 = vsel %vm805, %v762, 0.0
  %v814 = vsel %vm806, %v768, 0.0
  %v815 = vsel %vm807, %v774, 0.0
  %v816 = vsel %vm808, %v780, 0.0
  %v817 = vsel %vm809, %v786, 0.0
  %v818 = vsel %vm810, %v792, 0.0
  %v819 = vsel %vm811, %v798, 0.0
  %v820 = vsel %vm812, %v804, 0.0
  %v821 = vld [vmem:[%s4] sm:$0xff]
  %v822 = vld [vmem:[%s4 + $0x8] sm:$0xff]
  %v823 = vld [vmem:[%s4 + $0x10] sm:$0xff]
  %v824 = vld [vmem:[%s4 + $0x18] sm:$0xff]
  %v825 = vld [vmem:[%s4 + $0x20] sm:$0xff]
  %v826 = vld [vmem:[%s4 + $0x28] sm:$0xff]
  %v827 = vld [vmem:[%s4 + $0x30] sm:$0xff]
  %v828 = vld [vmem:[%s4 + $0x38] sm:$0xff]
  %v829 = vld [vmem:[%s4 + $0x40] sm:$0xff]
  %v830 = vld [vmem:[%s4 + $0x48] sm:$0xff]
  %v831 = vld [vmem:[%s4 + $0x50] sm:$0xff]
  %v832 = vld [vmem:[%s4 + $0x58] sm:$0xff]
  %v833 = vld [vmem:[%s4 + $0x60] sm:$0xff]
  %v834 = vld [vmem:[%s4 + $0x68] sm:$0xff]
  %v835 = vld [vmem:[%s4 + $0x70] sm:$0xff]
  %v836 = vld [vmem:[%s4 + $0x78] sm:$0xff]
  %v837 = vld [vmem:[%s5] sm:$0x1]
  %v839 = vlaneseq
  %v840 = vshrl.u32 %v839, 7
  %v841 = vsub.s32 0, %v840
  %v842 = vrot.slane %v837, %v841
  %vm852 = vcmask 1041409
  %v853 = vsel %vm852, %v814, %v813
  %vm854 = vcmask 1042434
  %v855 = vsel %vm854, %v815, %v853
  %vm856 = vcmask 1043459
  %v857 = vsel %vm856, %v816, %v855
  %vm858 = vcmask 1044484
  %v859 = vsel %vm858, %v817, %v857
  %vm860 = vcmask 1045509
  %v861 = vsel %vm860, %v818, %v859
  %vm862 = vcmask 1046534
  %v863 = vsel %vm862, %v819, %v861
  %vm864 = vcmask 1047559
  %v865 = vsel %vm864, %v820, %v863
  %867 = vmatprep.subr.mxu0 0.0
  %868 = vmatpush1.msra.mxu0 %v821
  %869 = vmatprep.subr.mxu0 0.0
  %870 = vmatpush1.msra.mxu0 %v822
  %871 = vmatprep.subr.mxu0 0.0
  %872 = vmatpush1.msra.mxu0 %v823
  %873 = vmatprep.subr.mxu0 0.0
  %874 = vmatpush1.msra.mxu0 %v824
  %875 = vmatprep.subr.mxu0 0.0
  %876 = vmatpush1.msra.mxu0 %v825
  %877 = vmatprep.subr.mxu0 0.0
  %878 = vmatpush1.msra.mxu0 %v826
  %879 = vmatprep.subr.mxu0 0.0
  %880 = vmatpush1.msra.mxu0 %v827
  %881 = vmatprep.subr.mxu0 0.0
  %882 = vmatpush1.msra.mxu0 %v828
  %883 = vmatprep.subr.mxu0 0.0
  %884 = vmatpush1.msra.mxu0 %v829
  %885 = vmatprep.subr.mxu0 0.0
  %886 = vmatpush1.msra.mxu0 %v830
  %887 = vmatprep.subr.mxu0 0.0
  %888 = vmatpush1.msra.mxu0 %v831
  %889 = vmatprep.subr.mxu0 0.0
  %890 = vmatpush1.msra.mxu0 %v832
  %891 = vmatprep.subr.mxu0 0.0
  %892 = vmatpush1.msra.mxu0 %v833
  %893 = vmatprep.subr.mxu0 0.0
  %894 = vmatpush1.msra.mxu0 %v834
  %895 = vmatprep.subr.mxu0 0.0
  %896 = vmatpush1.msra.mxu0 %v835
  %897 = vmatprep.subr.mxu0 0.0
  %898 = vmatpush1.msra.mxu0 %v836
  %899 = vmatprep.subr.mxu0 0.0
  %900 = vmatpush1.msra.mxu0 0.0
  %901 = vmatprep.subr.mxu0 0.0
  %902 = vmatpush1.msra.mxu0 0.0
  %903 = vmatprep.subr.mxu0 0.0
  %904 = vmatpush1.msra.mxu0 0.0
  %905 = vmatprep.subr.mxu0 0.0
  %906 = vmatpush1.msra.mxu0 0.0
  %907 = vmatprep.subr.mxu0 0.0
  %908 = vmatpush1.msra.mxu0 0.0
  %909 = vmatprep.subr.mxu0 0.0
  %910 = vmatpush1.msra.mxu0 0.0
  %911 = vmatprep.subr.mxu0 0.0
  %912 = vmatpush1.msra.mxu0 0.0
  %913 = vmatprep.subr.mxu0 0.0
  %914 = vmatpush1.msra.mxu0 0.0
  %915 = vmatprep.subr.mxu0 0.0
  %916 = vmatpush1.msra.mxu0 0.0
  %917 = vmatprep.subr.mxu0 0.0
  %918 = vmatpush1.msra.mxu0 0.0
  %919 = vmatprep.subr.mxu0 0.0
  %920 = vmatpush1.msra.mxu0 0.0
  %921 = vmatprep.subr.mxu0 0.0
  %922 = vmatpush1.msra.mxu0 0.0
  %923 = vmatprep.subr.mxu0 0.0
  %924 = vmatpush1.msra.mxu0 0.0
  %925 = vmatprep.subr.mxu0 0.0
  %926 = vmatpush1.msra.mxu0 0.0
  %927 = vmatprep.subr.mxu0 0.0
  %928 = vmatpush1.msra.mxu0 0.0
  %929 = vmatprep.subr.mxu0 0.0
  %930 = vmatpush1.msra.mxu0 0.0
  %931 = vmatprep.mubr.f32.mxu0 0.0
  %932 = vmatmul.mubr.f32.gmra.mrb[0].mxu0 %v865
  %v933 = vpop.f32.mrb[0].mxu0
  %v934 = vadd.f32 %v842, %v933
  %v935 = vpop.f32.mrb[0].mxu0
  %936 = vdwg.mxu0
  %937 = vmax.xlane.f32.xlu0 %v934
  %v938 = vpop.xlane.xlu0 %937
  %v939 = vsub.f32 %v934, %v938
  %v940 = vmul.f32 %v939, 1.442695
  %v941 = vpow.pop %v940
  %942 = vadd.xlane.f32.xlu0 %v941
  %v943 = vpop.xlane.xlu0 %942
  %v944 = vrcp.pop %v943
  %v945 = vmul.f32 %v941, %v944
  %946 = vst [vmem:[%s6] sm:$0xff] %v945
  // Predicated region
  $region26: #{cnn_forward.1} parent=0 // pred_check
    _
  $region27: #{cnn_forward.1} parent=0 // pred_check_branch
    %948 = sbr.rel (0) target = $region29
  $region28: #{cnn_forward.1} parent=0 // pred_region
    _
  $region29: #{cnn_forward.1} parent=0 // pred_fallthru
    _
  // Predicated region
  $region30: #{cnn_forward.1} parent=0 // pred_check
    _
  $region31: #{cnn_forward.1} parent=0 // pred_check_branch
    %950 = sbr.rel (0) target = $region33
  $region32: #{cnn_forward.1} parent=0 // pred_region
    _
  $region33: #{cnn_forward.1} parent=0 // pred_fallthru
    _

</llo_original>
